<compile_context>
chip_gen: v7x
topology: tpu7x:2x2x1
jax: 0.10.0
libtpu: 0.0.40
codegen_flags: <defaults>
</compile_context>

<pallas_src>
import functools

import jax
import jax.numpy as jnp
from jax import lax
from jax.experimental import pallas as pl
from jax.experimental.pallas import tpu as pltpu

# PyTorch module defaults
P_POS = 2
P_NEG = 2
CLIP_POS = 0.7
CLIP_NEG = 0.5
POS_WEIGHT = 0.3

_LANE = 128
_SUBLANE = 8
_TARGET_STEP_BYTES = 4 * 1024 * 1024   # ~4 MiB of input moved per grid step


def _vmem_budget():
    """Returns (vmem_limit_bytes, budget for the double-buffered input set)."""
    try:
        cap = int(pltpu.get_tpu_info().vmem_capacity_bytes)
    except Exception:
        cap = 64 * 1024 * 1024          # conservative: v7x per-TC VMEM
    limit = min(cap * 3 // 4, 96 * 1024 * 1024)   # headroom on every generation
    return limit, limit // 2


def _pick_block(total_units, unit_bytes, granularity, ws_budget, step_bytes):
    """Largest block (multiple of `granularity`) that (a) moves ~step_bytes of
    input per grid step and (b) double-buffers within ws_budget.  Falls back to
    the full extent when it is smaller than one granule (full-dim blocks are
    always legal)."""
    if total_units <= granularity:
        return total_units
    cap = max(granularity,
              min(step_bytes // unit_bytes, ws_budget // (2 * unit_bytes)))
    blk = min(total_units, cap)
    return max(granularity, (blk // granularity) * granularity)


def _ipow(v, p):
    # static small-int powers lower to plain VPU multiplies (no transcendental pow)
    if isinstance(p, int) and 1 <= p <= 4:
        out = v
        for _ in range(p - 1):
            out = out * v
        return out
    return v ** p


def _per_sample_sum(v):
    # reduce every trailing axis -> (bm, 1), staying >= 2-D throughout
    while v.ndim > 2:
        v = jnp.sum(v, axis=1)                      # sublane/row reduction
    return jnp.sum(v, axis=1, keepdims=True)        # lane reduction


def _focal_dice_kernel(x_ref, t_ref, out_ref,
                       acc_np_ref, acc_dp_ref, acc_nn_ref, acc_dn_ref, *,
                       axis1_block, axis1_valid, need_mask,
                       clip_pos, clip_neg, pos_weight, p_pos, p_neg):
    """grid = (batch tiles [parallel], class/reduction tiles [arbitrary])."""
    j = pl.program_id(1)
    last = pl.num_programs(1) - 1

    @pl.when(j == 0)
    def _init():
        acc_np_ref[...] = jnp.zeros_like(acc_np_ref)
        acc_dp_ref[...] = jnp.zeros_like(acc_dp_ref)
        acc_nn_ref[...] = jnp.zeros_like(acc_nn_ref)
        acc_dn_ref[...] = jnp.zeros_like(acc_dn_ref)

    def accumulate(masked):
        # Upcast AFTER the DMA: the HBM stream stays in the native dtype.
        x = x_ref[...].astype(jnp.float32)
        t = t_ref[...].astype(jnp.float32)

        if masked:
            # Implicit partial last block: the tail holds unspecified data, so
            # mask the raw inputs BEFORE the sigmoid (NaN-safe) and zero the
            # tail's contributions afterwards.
            idx = lax.broadcasted_iota(jnp.int32, x.shape, 1) + j * axis1_block
            keep_b = idx < axis1_valid
            keep = keep_b.astype(jnp.float32)
            x = jnp.where(keep_b, x, 0.0)
            t = jnp.where(keep_b, t, 0.0)

        predict = 1.0 / (1.0 + jnp.exp(-x))          # exp on the EUP

        # positive branch: p_pos = clamp(predict + clip_pos, max=1) * predict
        p_pos_v = predict
        if clip_pos is not None and clip_pos >= 0:
            p_pos_v = jnp.minimum(predict + clip_pos, 1.0) * predict
        num_pos = p_pos_v * t
        den_pos = _ipow(p_pos_v, p_pos) + _ipow(t, p_pos)

        # negative branch: p_neg = clamp((1-predict) + clip_neg, max=1) * (1-predict)
        xs_neg = 1.0 - predict
        t_neg = 1.0 - t
        p_neg_v = xs_neg
        if clip_neg is not None and clip_neg >= 0:
            p_neg_v = jnp.minimum(xs_neg + clip_neg, 1.0) * xs_neg
        num_neg = p_neg_v * t_neg
        den_neg = _ipow(p_neg_v, p_neg) + _ipow(t_neg, p_neg)

        if masked:
            num_pos = num_pos * keep
            den_pos = den_pos * keep
            num_neg = num_neg * keep
            den_neg = den_neg * keep

        acc_np_ref[...] += _per_sample_sum(num_pos)
        acc_dp_ref[...] += _per_sample_sum(den_pos)
        acc_nn_ref[...] += _per_sample_sum(num_neg)
        acc_dn_ref[...] += _per_sample_sum(den_neg)

    if need_mask:
        # Mask work only on the last (partial) tile; bulk tiles stay unmasked.
        @pl.when(j < last)
        def _bulk():
            accumulate(False)

        @pl.when(j == last)
        def _tail():
            accumulate(True)
    else:
        accumulate(False)

    @pl.when(j == last)
    def _finalize():
        loss_pos = 1.0 - 2.0 * acc_np_ref[...] / acc_dp_ref[...]
        loss_neg = 1.0 - 2.0 * acc_nn_ref[...] / acc_dn_ref[...]
        out_ref[...] = (pos_weight * loss_pos
                        + (1.0 - pos_weight) * loss_neg).astype(out_ref.dtype)


def focal_dice_loss(logits, targets, *,
                    p_pos=P_POS, p_neg=P_NEG,
                    clip_pos=CLIP_POS, clip_neg=CLIP_NEG,
                    pos_weight=POS_WEIGHT, reduction='mean',
                    target_step_bytes=_TARGET_STEP_BYTES):
    """Pallas-TPU implementation of FocalDiceLoss.forward(input, target)."""
    assert logits.shape[0] == targets.shape[0], \
        "predict & target batch size don't match"
    b = logits.shape[0]
    x = jnp.reshape(logits, (b, -1))        # free reshape, native dtype kept
    t = jnp.reshape(targets, (b, -1))
    n = x.shape[1]

    bx = jnp.dtype(x.dtype).itemsize
    bt = jnp.dtype(t.dtype).itemsize
    vmem_limit, ws_budget = _vmem_budget()

    # Batch block: sublane-dense (8) when possible, else the whole batch.
    bm = _SUBLANE if (b % _SUBLANE == 0) else b

    if n % _LANE == 0 and n >= _LANE:
        # Sublane-dense 3-D view (B, N) -> (B, N/128, 128): free reshape, and
        # every vreg is fully packed even when B < 8.
        rows = n // _LANE
        x_in = x.reshape(b, rows, _LANE)
        t_in = t.reshape(b, rows, _LANE)
        unit_bytes = bm * _LANE * (bx + bt)          # bytes per row-unit
        r_blk = _pick_block(rows, unit_bytes, _SUBLANE, ws_budget,
                            target_step_bytes)
        grid = (b // bm, pl.cdiv(rows, r_blk))
        in_specs = [pl.BlockSpec((bm, r_blk, _LANE), lambda i, j: (i, j, 0)),
                    pl.BlockSpec((bm, r_blk, _LANE), lambda i, j: (i, j, 0))]
        axis1_block, axis1_valid = r_blk, rows
    else:
        # 2-D fallback (N not a multiple of 128): lane-tiled columns, ragged
        # tail handled in-kernel (no wrapper pad).
        x_in, t_in = x, t
        unit_bytes = bm * (bx + bt)                  # bytes per element column
        bn = _pick_block(n, unit_bytes, _LANE, ws_budget, target_step_bytes)
        grid = (b // bm, pl.cdiv(n, bn))
        in_specs = [pl.BlockSpec((bm, bn), lambda i, j: (i, j)),
                    pl.BlockSpec((bm, bn), lambda i, j: (i, j))]
        axis1_block, axis1_valid = bn, n

    need_mask = (axis1_valid % axis1_block) != 0

    kernel = functools.partial(
        _focal_dice_kernel,
        axis1_block=axis1_block, axis1_valid=axis1_valid, need_mask=need_mask,
        clip_pos=clip_pos, clip_neg=clip_neg, pos_weight=pos_weight,
        p_pos=p_pos, p_neg=p_neg)

    per_sample = pl.pallas_call(
        kernel,
        out_shape=jax.ShapeDtypeStruct((b, 1), jnp.float32),
        grid=grid,
        in_specs=in_specs,
        out_specs=pl.BlockSpec((bm, 1), lambda i, j: (i, 0)),
        scratch_shapes=[pltpu.VMEM((bm, 1), jnp.float32)] * 4,
        compiler_params=pltpu.CompilerParams(
            dimension_semantics=("parallel", "arbitrary"),
            vmem_limit_bytes=vmem_limit),
    )(x_in, t_in)

    loss = per_sample[:, 0]
    if reduction == 'mean':
        return jnp.mean(loss)
    elif reduction == 'sum':
        return jnp.sum(loss)
    elif reduction == 'none':
        return loss
    raise ValueError('Unexpected reduction {}'.format(reduction))


# --------------------------------------------------------------------------
# Pure-JAX reference (direct transcription of the PyTorch forward)
# --------------------------------------------------------------------------
def focal_dice_loss_ref(logits, targets, *,
                        p_pos=P_POS, p_neg=P_NEG,
                        clip_pos=CLIP_POS, clip_neg=CLIP_NEG,
                        pos_weight=POS_WEIGHT, reduction='mean'):
    b = logits.shape[0]
    x = jnp.reshape(logits, (b, -1)).astype(jnp.float32)
    target = jnp.reshape(targets, (b, -1)).astype(jnp.float32)
    predict = 1.0 / (1.0 + jnp.exp(-x))
    pp = predict
    if clip_pos is not None and clip_pos >= 0:
        pp = jnp.minimum(predict + clip_pos, 1.0) * predict
    num_pos = jnp.sum(pp * target, axis=1)
    den_pos = jnp.sum(pp ** p_pos + target ** p_pos, axis=1)
    xs_neg = 1.0 - predict
    pn = xs_neg
    if clip_neg is not None and clip_neg >= 0:
        pn = jnp.minimum(xs_neg + clip_neg, 1.0) * xs_neg
    num_neg = jnp.sum(pn * (1.0 - target), axis=1)
    den_neg = jnp.sum(pn ** p_neg + (1.0 - target) ** p_neg, axis=1)
    loss_pos = 1.0 - 2.0 * num_pos / den_pos
    loss_neg = 1.0 - 2.0 * num_neg / den_neg
    loss = loss_pos * pos_weight + loss_neg * (1.0 - pos_weight)
    if reduction == 'mean':
        return jnp.mean(loss)
    elif reduction == 'sum':
        return jnp.sum(loss)
    elif reduction == 'none':
        return loss
    raise ValueError(reduction)


if __name__ == "__main__":
    key = jax.random.PRNGKey(0)
    k1, k2, k3, k4 = jax.random.split(key, 4)

    # 1) f32, 300 labels (not a multiple of 128): exercises the 2-D fallback
    #    path, two reduction tiles, and ragged-tail masking in the last tile.
    B, C = 4, 300
    logits = jax.random.normal(k1, (B, C), jnp.float32)
    targets = (jax.random.uniform(k2, (B, C)) > 0.7).astype(jnp.float32)

    loss = focal_dice_loss(logits, targets)
    jax.block_until_ready(loss)
    ref = focal_dice_loss_ref(logits, targets)
    assert loss.shape == ()
    assert bool(jnp.allclose(loss, ref, rtol=1e-5, atol=1e-6)), (loss, ref)

    loss_none = focal_dice_loss(logits, targets, reduction='none')
    jax.block_until_ready(loss_none)
    ref_none = focal_dice_loss_ref(logits, targets, reduction='none')
    assert bool(jnp.allclose(loss_none, ref_none, rtol=1e-5, atol=1e-6))

    # 2) bf16 logits / bf16 targets, 2560 labels (= 20 x 128): sublane-dense
    #    3-D path with native-dtype HBM stream.  A tiny per-step byte target
    #    forces several reduction tiles plus a partial (masked) last row-tile.
    B2, C2 = 8, 2560
    logits2 = jax.random.normal(k3, (B2, C2), jnp.float32).astype(jnp.bfloat16)
    targets2 = (jax.random.uniform(k4, (B2, C2)) > 0.7).astype(jnp.bfloat16)

    loss2 = focal_dice_loss(logits2, targets2, reduction='none',
                            target_step_bytes=64 * 1024)
    jax.block_until_ready(loss2)
    ref2 = focal_dice_loss_ref(logits2, targets2, reduction='none')
    assert bool(jnp.allclose(loss2, ref2, rtol=1e-5, atol=1e-6)), (loss2, ref2)

    # 3) same inputs with the default (bytes-based) tiling + 'sum' reduction.
    loss2_sum = focal_dice_loss(logits2, targets2, reduction='sum')
    jax.block_until_ready(loss2_sum)
    ref2_sum = focal_dice_loss_ref(logits2, targets2, reduction='sum')
    assert bool(jnp.allclose(loss2_sum, ref2_sum, rtol=1e-5, atol=1e-6))

    print("KERNEL_OK")
</pallas_src>

<mosaic_0001>
module attributes {stable_mosaic.version = 11 : i64} {
  func.func @_focal_dice_kernel(%arg0: i32, %arg1: i32, %arg2: memref<4x256xf32, #tpu.memory_space<vmem>>, %arg3: memref<4x256xf32, #tpu.memory_space<vmem>>, %arg4: memref<4x1xf32, #tpu.memory_space<vmem>>, %arg5: memref<4x1xf32, #tpu.memory_space<vmem>>, %arg6: memref<4x1xf32, #tpu.memory_space<vmem>>, %arg7: memref<4x1xf32, #tpu.memory_space<vmem>>, %arg8: memref<4x1xf32, #tpu.memory_space<vmem>>) attributes {dimension_semantics = [#tpu.dimension_semantics<parallel>, #tpu.dimension_semantics<arbitrary>], iteration_bounds = array<i64: 1, 2>, scalar_prefetch = 0 : i64, scratch_operands = 4 : i64, tpu.core_type = #tpu.core_type<tc>, window_params = [{transform_indices = @transform_0, window_bounds = array<i64: 4, 256>}, {transform_indices = @transform_1, window_bounds = array<i64: 4, 256>}, {transform_indices = @transform_2, window_bounds = array<i64: 4, 1>}]} {
    %c0_i32 = arith.constant 0 : i32
    %0 = arith.cmpi eq, %arg1, %c0_i32 : i32
    %1 = arith.extui %0 : i1 to i32
    %c0_i32_0 = arith.constant 0 : i32
    %2 = arith.cmpi ne, %1, %c0_i32_0 : i32
    scf.if %2 {
      %cst = arith.constant 0.000000e+00 : f32
      %12 = vector.broadcast %cst : f32 to vector<4x1xf32>
      %c0 = arith.constant 0 : index
      %c0_6 = arith.constant 0 : index
      %13 = vector.load %arg5[%c0, %c0_6] : memref<4x1xf32, #tpu.memory_space<vmem>>, vector<4x1xf32>
      tpu.vector_store %arg5[%c0, %c0_6], %12 {strides = array<i32>} : memref<4x1xf32, #tpu.memory_space<vmem>>, vector<4x1xf32>,
      %cst_7 = arith.constant 0.000000e+00 : f32
      %14 = vector.broadcast %cst_7 : f32 to vector<4x1xf32>
      %c0_8 = arith.constant 0 : index
      %c0_9 = arith.constant 0 : index
      %15 = vector.load %arg6[%c0_8, %c0_9] : memref<4x1xf32, #tpu.memory_space<vmem>>, vector<4x1xf32>
      tpu.vector_store %arg6[%c0_8, %c0_9], %14 {strides = array<i32>} : memref<4x1xf32, #tpu.memory_space<vmem>>, vector<4x1xf32>,
      %cst_10 = arith.constant 0.000000e+00 : f32
      %16 = vector.broadcast %cst_10 : f32 to vector<4x1xf32>
      %c0_11 = arith.constant 0 : index
      %c0_12 = arith.constant 0 : index
      %17 = vector.load %arg7[%c0_11, %c0_12] : memref<4x1xf32, #tpu.memory_space<vmem>>, vector<4x1xf32>
      tpu.vector_store %arg7[%c0_11, %c0_12], %16 {strides = array<i32>} : memref<4x1xf32, #tpu.memory_space<vmem>>, vector<4x1xf32>,
      %cst_13 = arith.constant 0.000000e+00 : f32
      %18 = vector.broadcast %cst_13 : f32 to vector<4x1xf32>
      %c0_14 = arith.constant 0 : index
      %c0_15 = arith.constant 0 : index
      %19 = vector.load %arg8[%c0_14, %c0_15] : memref<4x1xf32, #tpu.memory_space<vmem>>, vector<4x1xf32>
      tpu.vector_store %arg8[%c0_14, %c0_15], %18 {strides = array<i32>} : memref<4x1xf32, #tpu.memory_space<vmem>>, vector<4x1xf32>,
    } else {
    }
    %c1_i32 = arith.constant 1 : i32
    %3 = arith.cmpi slt, %arg1, %c1_i32 : i32
    %4 = arith.extui %3 : i1 to i32
    %c0_i32_1 = arith.constant 0 : i32
    %5 = arith.cmpi ne, %4, %c0_i32_1 : i32
    scf.if %5 {
      %c0 = arith.constant 0 : index
      %c0_6 = arith.constant 0 : index
      %12 = vector.load %arg2[%c0, %c0_6] : memref<4x256xf32, #tpu.memory_space<vmem>>, vector<4x256xf32>
      %c0_7 = arith.constant 0 : index
      %c0_8 = arith.constant 0 : index
      %13 = vector.load %arg3[%c0_7, %c0_8] : memref<4x256xf32, #tpu.memory_space<vmem>>, vector<4x256xf32>
      %cst = arith.constant 0.000000e+00 : f32
      %14 = vector.broadcast %cst : f32 to vector<4x256xf32>
      %15 = arith.subf %14, %12 : vector<4x256xf32>
      %16 = math.exp %15 : vector<4x256xf32>
      %cst_9 = arith.constant 1.000000e+00 : f32
      %17 = vector.broadcast %cst_9 : f32 to vector<4x256xf32>
      %18 = arith.addf %17, %16 : vector<4x256xf32>
      %cst_10 = arith.constant 1.000000e+00 : f32
      %19 = vector.broadcast %cst_10 : f32 to vector<4x256xf32>
      %20 = arith.divf %19, %18 : vector<4x256xf32>
      %cst_11 = arith.constant 0.699999988 : f32
      %21 = vector.broadcast %cst_11 : f32 to vector<4x256xf32>
      %22 = arith.addf %20, %21 : vector<4x256xf32>
      %cst_12 = arith.constant 1.000000e+00 : f32
      %23 = vector.broadcast %cst_12 : f32 to vector<4x256xf32>
      %24 = arith.minimumf %22, %23 : vector<4x256xf32>
      %25 = arith.mulf %24, %20 : vector<4x256xf32>
      %26 = arith.mulf %25, %13 : vector<4x256xf32>
      %27 = arith.mulf %25, %25 : vector<4x256xf32>
      %28 = arith.mulf %13, %13 : vector<4x256xf32>
      %29 = arith.addf %27, %28 : vector<4x256xf32>
      %cst_13 = arith.constant 1.000000e+00 : f32
      %30 = vector.broadcast %cst_13 : f32 to vector<4x256xf32>
      %31 = arith.subf %30, %20 : vector<4x256xf32>
      %cst_14 = arith.constant 1.000000e+00 : f32
      %32 = vector.broadcast %cst_14 : f32 to vector<4x256xf32>
      %33 = arith.subf %32, %13 : vector<4x256xf32>
      %cst_15 = arith.constant 5.000000e-01 : f32
      %34 = vector.broadcast %cst_15 : f32 to vector<4x256xf32>
      %35 = arith.addf %31, %34 : vector<4x256xf32>
      %cst_16 = arith.constant 1.000000e+00 : f32
      %36 = vector.broadcast %cst_16 : f32 to vector<4x256xf32>
      %37 = arith.minimumf %35, %36 : vector<4x256xf32>
      %38 = arith.mulf %37, %31 : vector<4x256xf32>
      %39 = arith.mulf %38, %33 : vector<4x256xf32>
      %40 = arith.mulf %38, %38 : vector<4x256xf32>
      %41 = arith.mulf %33, %33 : vector<4x256xf32>
      %42 = arith.addf %40, %41 : vector<4x256xf32>
      %c0_17 = arith.constant 0 : index
      %c0_18 = arith.constant 0 : index
      %43 = vector.load %arg5[%c0_17, %c0_18] : memref<4x1xf32, #tpu.memory_space<vmem>>, vector<4x1xf32>
      %cst_19 = arith.constant dense<0.000000e+00> : vector<4xf32>
      %44 = vector.multi_reduction <add>, %26, %cst_19 [1] : vector<4x256xf32> to vector<4xf32>
      %45 = vector.shape_cast %44 : vector<4xf32> to vector<4x1xf32>
      %46 = arith.addf %43, %45 : vector<4x1xf32>
      %c0_20 = arith.constant 0 : index
      %c0_21 = arith.constant 0 : index
      %47 = vector.load %arg5[%c0_20, %c0_21] : memref<4x1xf32, #tpu.memory_space<vmem>>, vector<4x1xf32>
      tpu.vector_store %arg5[%c0_20, %c0_21], %46 {strides = array<i32>} : memref<4x1xf32, #tpu.memory_space<vmem>>, vector<4x1xf32>,
      %c0_22 = arith.constant 0 : index
      %c0_23 = arith.constant 0 : index
      %48 = vector.load %arg6[%c0_22, %c0_23] : memref<4x1xf32, #tpu.memory_space<vmem>>, vector<4x1xf32>
      %cst_24 = arith.constant dense<0.000000e+00> : vector<4xf32>
      %49 = vector.multi_reduction <add>, %29, %cst_24 [1] : vector<4x256xf32> to vector<4xf32>
      %50 = vector.shape_cast %49 : vector<4xf32> to vector<4x1xf32>
      %51 = arith.addf %48, %50 : vector<4x1xf32>
      %c0_25 = arith.constant 0 : index
      %c0_26 = arith.constant 0 : index
      %52 = vector.load %arg6[%c0_25, %c0_26] : memref<4x1xf32, #tpu.memory_space<vmem>>, vector<4x1xf32>
      tpu.vector_store %arg6[%c0_25, %c0_26], %51 {strides = array<i32>} : memref<4x1xf32, #tpu.memory_space<vmem>>, vector<4x1xf32>,
      %c0_27 = arith.constant 0 : index
      %c0_28 = arith.constant 0 : index
      %53 = vector.load %arg7[%c0_27, %c0_28] : memref<4x1xf32, #tpu.memory_space<vmem>>, vector<4x1xf32>
      %cst_29 = arith.constant dense<0.000000e+00> : vector<4xf32>
      %54 = vector.multi_reduction <add>, %39, %cst_29 [1] : vector<4x256xf32> to vector<4xf32>
      %55 = vector.shape_cast %54 : vector<4xf32> to vector<4x1xf32>
      %56 = arith.addf %53, %55 : vector<4x1xf32>
      %c0_30 = arith.constant 0 : index
      %c0_31 = arith.constant 0 : index
      %57 = vector.load %arg7[%c0_30, %c0_31] : memref<4x1xf32, #tpu.memory_space<vmem>>, vector<4x1xf32>
      tpu.vector_store %arg7[%c0_30, %c0_31], %56 {strides = array<i32>} : memref<4x1xf32, #tpu.memory_space<vmem>>, vector<4x1xf32>,
      %c0_32 = arith.constant 0 : index
      %c0_33 = arith.constant 0 : index
      %58 = vector.load %arg8[%c0_32, %c0_33] : memref<4x1xf32, #tpu.memory_space<vmem>>, vector<4x1xf32>
      %cst_34 = arith.constant dense<0.000000e+00> : vector<4xf32>
      %59 = vector.multi_reduction <add>, %42, %cst_34 [1] : vector<4x256xf32> to vector<4xf32>
      %60 = vector.shape_cast %59 : vector<4xf32> to vector<4x1xf32>
      %61 = arith.addf %58, %60 : vector<4x1xf32>
      %c0_35 = arith.constant 0 : index
      %c0_36 = arith.constant 0 : index
      %62 = vector.load %arg8[%c0_35, %c0_36] : memref<4x1xf32, #tpu.memory_space<vmem>>, vector<4x1xf32>
      tpu.vector_store %arg8[%c0_35, %c0_36], %61 {strides = array<i32>} : memref<4x1xf32, #tpu.memory_space<vmem>>, vector<4x1xf32>,
    } else {
    }
    %c1_i32_2 = arith.constant 1 : i32
    %6 = arith.cmpi eq, %arg1, %c1_i32_2 : i32
    %7 = arith.extui %6 : i1 to i32
    %c0_i32_3 = arith.constant 0 : i32
    %8 = arith.cmpi ne, %7, %c0_i32_3 : i32
    scf.if %8 {
      %c0 = arith.constant 0 : index
      %c0_6 = arith.constant 0 : index
      %12 = vector.load %arg2[%c0, %c0_6] : memref<4x256xf32, #tpu.memory_space<vmem>>, vector<4x256xf32>
      %c0_7 = arith.constant 0 : index
      %c0_8 = arith.constant 0 : index
      %13 = vector.load %arg3[%c0_7, %c0_8] : memref<4x256xf32, #tpu.memory_space<vmem>>, vector<4x256xf32>
      %14 = tpu.iota {dimensions = array<i32: 1>} : vector<4x256xi32>
      %c256_i32 = arith.constant 256 : i32
      %15 = arith.muli %arg1, %c256_i32 : i32
      %16 = vector.broadcast %15 : i32 to vector<4x256xi32>
      %17 = arith.addi %14, %16 : vector<4x256xi32>
      %c300_i32 = arith.constant 300 : i32
      %18 = vector.broadcast %c300_i32 : i32 to vector<4x256xi32>
      %19 = arith.cmpi slt, %17, %18 : vector<4x256xi32>
      %20 = arith.extui %19 : vector<4x256xi1> to vector<4x256xi32>
      %21 = arith.sitofp %20 : vector<4x256xi32> to vector<4x256xf32>
      %cst = arith.constant 0.000000e+00 : f32
      %22 = vector.broadcast %cst : f32 to vector<4x256xf32>
      %23 = arith.select %19, %12, %22 : vector<4x256xi1>, vector<4x256xf32>
      %cst_9 = arith.constant 0.000000e+00 : f32
      %24 = vector.broadcast %cst_9 : f32 to vector<4x256xf32>
      %25 = arith.select %19, %13, %24 : vector<4x256xi1>, vector<4x256xf32>
      %cst_10 = arith.constant 0.000000e+00 : f32
      %26 = vector.broadcast %cst_10 : f32 to vector<4x256xf32>
      %27 = arith.subf %26, %23 : vector<4x256xf32>
      %28 = math.exp %27 : vector<4x256xf32>
      %cst_11 = arith.constant 1.000000e+00 : f32
      %29 = vector.broadcast %cst_11 : f32 to vector<4x256xf32>
      %30 = arith.addf %29, %28 : vector<4x256xf32>
      %cst_12 = arith.constant 1.000000e+00 : f32
      %31 = vector.broadcast %cst_12 : f32 to vector<4x256xf32>
      %32 = arith.divf %31, %30 : vector<4x256xf32>
      %cst_13 = arith.constant 0.699999988 : f32
      %33 = vector.broadcast %cst_13 : f32 to vector<4x256xf32>
      %34 = arith.addf %32, %33 : vector<4x256xf32>
      %cst_14 = arith.constant 1.000000e+00 : f32
      %35 = vector.broadcast %cst_14 : f32 to vector<4x256xf32>
      %36 = arith.minimumf %34, %35 : vector<4x256xf32>
      %37 = arith.mulf %36, %32 : vector<4x256xf32>
      %38 = arith.mulf %37, %25 : vector<4x256xf32>
      %39 = arith.mulf %37, %37 : vector<4x256xf32>
      %40 = arith.mulf %25, %25 : vector<4x256xf32>
      %41 = arith.addf %39, %40 : vector<4x256xf32>
      %cst_15 = arith.constant 1.000000e+00 : f32
      %42 = vector.broadcast %cst_15 : f32 to vector<4x256xf32>
      %43 = arith.subf %42, %32 : vector<4x256xf32>
      %cst_16 = arith.constant 1.000000e+00 : f32
      %44 = vector.broadcast %cst_16 : f32 to vector<4x256xf32>
      %45 = arith.subf %44, %25 : vector<4x256xf32>
      %cst_17 = arith.constant 5.000000e-01 : f32
      %46 = vector.broadcast %cst_17 : f32 to vector<4x256xf32>
      %47 = arith.addf %43, %46 : vector<4x256xf32>
      %cst_18 = arith.constant 1.000000e+00 : f32
      %48 = vector.broadcast %cst_18 : f32 to vector<4x256xf32>
      %49 = arith.minimumf %47, %48 : vector<4x256xf32>
      %50 = arith.mulf %49, %43 : vector<4x256xf32>
      %51 = arith.mulf %50, %45 : vector<4x256xf32>
      %52 = arith.mulf %50, %50 : vector<4x256xf32>
      %53 = arith.mulf %45, %45 : vector<4x256xf32>
      %54 = arith.addf %52, %53 : vector<4x256xf32>
      %55 = arith.mulf %38, %21 : vector<4x256xf32>
      %56 = arith.mulf %41, %21 : vector<4x256xf32>
      %57 = arith.mulf %51, %21 : vector<4x256xf32>
      %58 = arith.mulf %54, %21 : vector<4x256xf32>
      %c0_19 = arith.constant 0 : index
      %c0_20 = arith.constant 0 : index
      %59 = vector.load %arg5[%c0_19, %c0_20] : memref<4x1xf32, #tpu.memory_space<vmem>>, vector<4x1xf32>
      %cst_21 = arith.constant dense<0.000000e+00> : vector<4xf32>
      %60 = vector.multi_reduction <add>, %55, %cst_21 [1] : vector<4x256xf32> to vector<4xf32>
      %61 = vector.shape_cast %60 : vector<4xf32> to vector<4x1xf32>
      %62 = arith.addf %59, %61 : vector<4x1xf32>
      %c0_22 = arith.constant 0 : index
      %c0_23 = arith.constant 0 : index
      %63 = vector.load %arg5[%c0_22, %c0_23] : memref<4x1xf32, #tpu.memory_space<vmem>>, vector<4x1xf32>
      tpu.vector_store %arg5[%c0_22, %c0_23], %62 {strides = array<i32>} : memref<4x1xf32, #tpu.memory_space<vmem>>, vector<4x1xf32>,
      %c0_24 = arith.constant 0 : index
      %c0_25 = arith.constant 0 : index
      %64 = vector.load %arg6[%c0_24, %c0_25] : memref<4x1xf32, #tpu.memory_space<vmem>>, vector<4x1xf32>
      %cst_26 = arith.constant dense<0.000000e+00> : vector<4xf32>
      %65 = vector.multi_reduction <add>, %56, %cst_26 [1] : vector<4x256xf32> to vector<4xf32>
      %66 = vector.shape_cast %65 : vector<4xf32> to vector<4x1xf32>
      %67 = arith.addf %64, %66 : vector<4x1xf32>
      %c0_27 = arith.constant 0 : index
      %c0_28 = arith.constant 0 : index
      %68 = vector.load %arg6[%c0_27, %c0_28] : memref<4x1xf32, #tpu.memory_space<vmem>>, vector<4x1xf32>
      tpu.vector_store %arg6[%c0_27, %c0_28], %67 {strides = array<i32>} : memref<4x1xf32, #tpu.memory_space<vmem>>, vector<4x1xf32>,
      %c0_29 = arith.constant 0 : index
      %c0_30 = arith.constant 0 : index
      %69 = vector.load %arg7[%c0_29, %c0_30] : memref<4x1xf32, #tpu.memory_space<vmem>>, vector<4x1xf32>
      %cst_31 = arith.constant dense<0.000000e+00> : vector<4xf32>
      %70 = vector.multi_reduction <add>, %57, %cst_31 [1] : vector<4x256xf32> to vector<4xf32>
      %71 = vector.shape_cast %70 : vector<4xf32> to vector<4x1xf32>
      %72 = arith.addf %69, %71 : vector<4x1xf32>
      %c0_32 = arith.constant 0 : index
      %c0_33 = arith.constant 0 : index
      %73 = vector.load %arg7[%c0_32, %c0_33] : memref<4x1xf32, #tpu.memory_space<vmem>>, vector<4x1xf32>
      tpu.vector_store %arg7[%c0_32, %c0_33], %72 {strides = array<i32>} : memref<4x1xf32, #tpu.memory_space<vmem>>, vector<4x1xf32>,
      %c0_34 = arith.constant 0 : index
      %c0_35 = arith.constant 0 : index
      %74 = vector.load %arg8[%c0_34, %c0_35] : memref<4x1xf32, #tpu.memory_space<vmem>>, vector<4x1xf32>
      %cst_36 = arith.constant dense<0.000000e+00> : vector<4xf32>
      %75 = vector.multi_reduction <add>, %58, %cst_36 [1] : vector<4x256xf32> to vector<4xf32>
      %76 = vector.shape_cast %75 : vector<4xf32> to vector<4x1xf32>
      %77 = arith.addf %74, %76 : vector<4x1xf32>
      %c0_37 = arith.constant 0 : index
      %c0_38 = arith.constant 0 : index
      %78 = vector.load %arg8[%c0_37, %c0_38] : memref<4x1xf32, #tpu.memory_space<vmem>>, vector<4x1xf32>
      tpu.vector_store %arg8[%c0_37, %c0_38], %77 {strides = array<i32>} : memref<4x1xf32, #tpu.memory_space<vmem>>, vector<4x1xf32>,
    } else {
    }
    %c1_i32_4 = arith.constant 1 : i32
    %9 = arith.cmpi eq, %arg1, %c1_i32_4 : i32
    %10 = arith.extui %9 : i1 to i32
    %c0_i32_5 = arith.constant 0 : i32
    %11 = arith.cmpi ne, %10, %c0_i32_5 : i32
    scf.if %11 {
      %c0 = arith.constant 0 : index
      %c0_6 = arith.constant 0 : index
      %12 = vector.load %arg5[%c0, %c0_6] : memref<4x1xf32, #tpu.memory_space<vmem>>, vector<4x1xf32>
      %cst = arith.constant 2.000000e+00 : f32
      %13 = vector.broadcast %cst : f32 to vector<4x1xf32>
      %14 = arith.mulf %13, %12 : vector<4x1xf32>
      %c0_7 = arith.constant 0 : index
      %c0_8 = arith.constant 0 : index
      %15 = vector.load %arg6[%c0_7, %c0_8] : memref<4x1xf32, #tpu.memory_space<vmem>>, vector<4x1xf32>
      %16 = arith.divf %14, %15 : vector<4x1xf32>
      %cst_9 = arith.constant 1.000000e+00 : f32
      %17 = vector.broadcast %cst_9 : f32 to vector<4x1xf32>
      %18 = arith.subf %17, %16 : vector<4x1xf32>
      %c0_10 = arith.constant 0 : index
      %c0_11 = arith.constant 0 : index
      %19 = vector.load %arg7[%c0_10, %c0_11] : memref<4x1xf32, #tpu.memory_space<vmem>>, vector<4x1xf32>
      %cst_12 = arith.constant 2.000000e+00 : f32
      %20 = vector.broadcast %cst_12 : f32 to vector<4x1xf32>
      %21 = arith.mulf %20, %19 : vector<4x1xf32>
      %c0_13 = arith.constant 0 : index
      %c0_14 = arith.constant 0 : index
      %22 = vector.load %arg8[%c0_13, %c0_14] : memref<4x1xf32, #tpu.memory_space<vmem>>, vector<4x1xf32>
      %23 = arith.divf %21, %22 : vector<4x1xf32>
      %cst_15 = arith.constant 1.000000e+00 : f32
      %24 = vector.broadcast %cst_15 : f32 to vector<4x1xf32>
      %25 = arith.subf %24, %23 : vector<4x1xf32>
      %cst_16 = arith.constant 3.000000e-01 : f32
      %26 = vector.broadcast %cst_16 : f32 to vector<4x1xf32>
      %27 = arith.mulf %26, %18 : vector<4x1xf32>
      %cst_17 = arith.constant 0.699999988 : f32
      %28 = vector.broadcast %cst_17 : f32 to vector<4x1xf32>
      %29 = arith.mulf %28, %25 : vector<4x1xf32>
      %30 = arith.addf %27, %29 : vector<4x1xf32>
      %c0_18 = arith.constant 0 : index
      %c0_19 = arith.constant 0 : index
      %31 = vector.load %arg4[%c0_18, %c0_19] : memref<4x1xf32, #tpu.memory_space<vmem>>, vector<4x1xf32>
      tpu.vector_store %arg4[%c0_18, %c0_19], %30 {strides = array<i32>} : memref<4x1xf32, #tpu.memory_space<vmem>>, vector<4x1xf32>,
    } else {
    }
    return
  }
  func.func @transform_0(%arg0: i32, %arg1: i32) -> (i32, i32) {
    %c0_i32 = arith.constant 0 : i32
    return %arg0, %arg1 : i32, i32
  }
  func.func @transform_1(%arg0: i32, %arg1: i32) -> (i32, i32) {
    %c0_i32 = arith.constant 0 : i32
    return %arg0, %arg1 : i32, i32
  }
  func.func @transform_2(%arg0: i32, %arg1: i32) -> (i32, i32) {
    %c0_i32 = arith.constant 0 : i32
    %c0_i32_0 = arith.constant 0 : i32
    return %arg0, %c0_i32 : i32, i32
  }
}

</mosaic_0001>

<llo_original>
// kernel: tpu_custom_call.1
$region0: #{tpu_custom_call.1}
  #allocation0 [shape = 'u32[]', space=smem, size = 0x4, offset = 0x4, fixed_abs, tag = 'smem constant byte address 0x4 - core index']
  #allocation1 [shape = 'u32[144,128]{1,0:T(1,128)}', space=vmem, size = 0x12000, scoped, tag = 'internal scratch']
  #allocation2 [shape = 'f32[4,1]{1,0:T(4,128)}', space=vmem, size = 0x800, scoped, tag = 'scratch operand']
  #allocation3 [shape = 'f32[4,1]{1,0:T(4,128)}', space=vmem, size = 0x800, scoped, tag = 'scratch operand']
  #allocation4 [shape = 'f32[4,1]{1,0:T(4,128)}', space=vmem, size = 0x800, scoped, tag = 'scratch operand']
  #allocation5 [shape = 'f32[4,1]{1,0:T(4,128)}', space=vmem, size = 0x800, scoped, tag = 'scratch operand']
  %s0 = inlined_call_operand.hbm [shape: f32[4,300], index: 0, kind: input, shape index: {}]
  %s1 = inlined_call_operand.hbm [shape: f32[4,300], index: 1, kind: input, shape index: {}]
  %s2 = inlined_call_operand.vmem [shape: f32[4,1], index: 2, kind: output, shape index: {}]
  %s3 = sld [smem:[#allocation0]]
  $region61: #{tpu_custom_call.1} parent=0
    _
  %s5 = ssub.s32 1, %s3
  %s6 = scalar_select 0, %s5, %s3
  $region1: #{tpu_custom_call.1} parent=0
    #allocation6 [shape = 'u8[8192]{0}', space=vmem, size = 0x2000, scoped, tag = 'input window, operand 0']
    #allocation7 [shape = 's32[2]{0}', space=sflag, size = 0x8, scoped, tag = 'scoped memory for tpu_custom_call.1']
    #allocation8 [shape = 'u8[8192]{0}', space=vmem, size = 0x2000, scoped, tag = 'input window, operand 1']
    #allocation9 [shape = 's32[2]{0}', space=sflag, size = 0x8, scoped, tag = 'scoped memory for tpu_custom_call.1']
    %7 = vsyncpa [#allocation7], 0
    %s8 = scalar_lea.sflag [#allocation7], 1
    %9 = vsyncpa %s8, 0
    %10 = vsyncpa [#allocation9], 0
    %s11 = scalar_lea.sflag [#allocation9], 1
    %12 = vsyncpa %s11, 0
    loop: start=0, step=1, limit=4
    $region2: #{tpu_custom_call.1} parent=1 // loop_pre_header
      _
    $region3: #{tpu_custom_call.1} parent=1 // loop_header
      %s14 = sphi 0, %s18
      %p15 = scmp.ge.s32.totalorder %s14, 4
      %s21 = sphi 0, %s33
      %s22 = sphi 0, %s29
      %s23 = sphi 0, %s21
      %s24 = sphi 0, %s22
      %s25 = sphi 0, %s23
      %s26 = sphi 0, %s24
      %s38 = sphi 0, %s40
      %s41 = sphi 0, %s38
      %s42 = sphi 0, %s41
      %s58 = sphi 0, %s42
      %s66 = sphi 0, %s68
      %s69 = sphi 0, %s66
      %s70 = sphi 0, %s69
      %s86 = sphi 0, %s70
      %s92 = sphi 0, %s94
      %s95 = sphi 0, %s92
      %s96 = sphi 0, %s95
      %s112 = sphi 0, %s96
    $region4: #{tpu_custom_call.1} parent=1 // loop_header_branch
      %17 = sbr.rel (%p15) target = $region8
    $region5: #{tpu_custom_call.1} parent=1 // loop_body
      %s19 = ssub.s32 %s14, 1
      %s20 = ssub.s32 %s14, 2
      %s27 = sadd.s32 1, %s22
      %p28 = scmp.ge.s32.totalorder %s27, 2
      %s29 = scalar_select %p28, 0, %s27
      %s30 = sadd.s32 1, %s21
      %s31 = scalar_select %p28, %s30, %s21
      %p32 = scmp.ge.s32.totalorder %s31, 1
      %s33 = scalar_select %p32, 0, %s31
      %s34 = ssub.s32 %s21, %s33
      %s35 = ssub.s32 %s22, %s29
      %s36 = sor.u32 %s34, %s35
      %p37 = scmp.eq.s32.totalorder %s36, 0
      %s39 = sadd.s32 %s38, 1
      %s40 = scalar_select %p37, %s38, %s39
      %p43 = pneg %p37
      %p44 = scmp.eq.s32.totalorder %s14, 1
      %p45 = por %p43, %p44
      %p46 = scmp.ne.s32.totalorder %s38, %s41
      %p47 = scmp.eq.s32.totalorder %s14, 0
      %p48 = por %p46, %p47
      %p49 = scmp.ne.s32.totalorder %s38, %s41
      %p50 = scmp.eq.s32.totalorder %s19, 1
      %p51 = por %p49, %p50
      %p52 = scmp.ne.s32.totalorder %s41, %s42
      %p53 = scmp.eq.s32.totalorder %s19, 0
      %p54 = por %p52, %p53
      %p55 = scmp.ne.s32.totalorder %s41, %s42
      %p56 = scmp.eq.s32.totalorder %s20, 1
      %p57 = por %p55, %p56
      %p59 = scmp.ne.s32.totalorder %s42, %s58
      %p60 = scmp.eq.s32.totalorder %s20, 0
      %p61 = por %p59, %p60
      %s62 = ssub.s32 %s21, %s33
      %s63 = ssub.s32 %s22, %s29
      %s64 = sor.u32 %s62, %s63
      %p65 = scmp.eq.s32.totalorder %s64, 0
      %s67 = sadd.s32 %s66, 1
      %s68 = scalar_select %p65, %s66, %s67
      %p71 = pneg %p65
      %p72 = scmp.eq.s32.totalorder %s14, 1
      %p73 = por %p71, %p72
      %p74 = scmp.ne.s32.totalorder %s66, %s69
      %p75 = scmp.eq.s32.totalorder %s14, 0
      %p76 = por %p74, %p75
      %p77 = scmp.ne.s32.totalorder %s66, %s69
      %p78 = scmp.eq.s32.totalorder %s19, 1
      %p79 = por %p77, %p78
      %p80 = scmp.ne.s32.totalorder %s69, %s70
      %p81 = scmp.eq.s32.totalorder %s19, 0
      %p82 = por %p80, %p81
      %p83 = scmp.ne.s32.totalorder %s69, %s70
      %p84 = scmp.eq.s32.totalorder %s20, 1
      %p85 = por %p83, %p84
      %p87 = scmp.ne.s32.totalorder %s70, %s86
      %p88 = scmp.eq.s32.totalorder %s20, 0
      %p89 = por %p87, %p88
      %s90 = ssub.s32 %s21, %s33
      %p91 = scmp.eq.s32.totalorder %s90, 0
      %s93 = sadd.s32 %s92, 1
      %s94 = scalar_select %p91, %s92, %s93
      %p97 = pneg %p91
      %p98 = scmp.eq.s32.totalorder %s14, 1
      %p99 = por %p97, %p98
      %p100 = scmp.ne.s32.totalorder %s92, %s95
      %p101 = scmp.eq.s32.totalorder %s14, 0
      %p102 = por %p100, %p101
      %p103 = scmp.ne.s32.totalorder %s92, %s95
      %p104 = scmp.eq.s32.totalorder %s19, 1
      %p105 = por %p103, %p104
      %p106 = scmp.ne.s32.totalorder %s95, %s96
      %p107 = scmp.eq.s32.totalorder %s19, 0
      %p108 = por %p106, %p107
      %p109 = scmp.ne.s32.totalorder %s95, %s96
      %p110 = scmp.eq.s32.totalorder %s20, 1
      %p111 = por %p109, %p110
      %p113 = scmp.ne.s32.totalorder %s96, %s112
      %p114 = scmp.eq.s32.totalorder %s20, 0
      %p115 = por %p113, %p114
      %p116 = scmp.le.s32.totalorder 1, %s14
      %p117 = scmp.lt.s32.totalorder %s14, 3
      %p118 = pnand %p116, %p117
      %p119 = pneg %p118
      // Predicated region
      $region9: #{tpu_custom_call.1} parent=5 // pred_check
        _
      $region10: #{tpu_custom_call.1} parent=5 // pred_check_branch
        %121 = sbr.rel (%p118) target = $region12
      $region11: #{tpu_custom_call.1} parent=5 // pred_region
        %s122 = ssub.s32 %s14, 1
      $region12: #{tpu_custom_call.1} parent=5 // pred_fallthru
        _
      %p123 = scmp.lt.s32.totalorder %s14, 2
      // Predicated region
      $region13: #{tpu_custom_call.1} parent=5 // pred_check
        %p124 = pneg %p123
      $region14: #{tpu_custom_call.1} parent=5 // pred_check_branch
        %126 = sbr.rel (%p124) target = $region16
      $region15: #{tpu_custom_call.1} parent=5 // pred_region
        // Predicated region
        $region17: #{tpu_custom_call.1} parent=15 // pred_check
          %p127 = pneg %p48
        $region18: #{tpu_custom_call.1} parent=15 // pred_check_branch
          %129 = sbr.rel (%p127) target = $region20
        $region19: #{tpu_custom_call.1} parent=15 // pred_region
          %s130 = sand.u32 %s38, 1
          %s131 = scalar_lea.sflag [#allocation7], %s130
          %s132 = sand.u32 %s38, 1
          %s133 = smul.addr %s132, 8
          %s134 = scalar_lea.vmem [#allocation6], %s133
          %s135 = smul.u32 2, %s22
          %s136 = ssub.s32 3, %s135
          %p137 = scmp.lt.s32.totalorder %s136, 2
          %s138 = scalar_select %p137, %s136, 2
          %s139 = smul.u32 64, %s138
          %s141 = ssub.s32 128, %s139
          %142 = vsyncadd %s131, %s141
          %p143 = scmp.ne.s32.totalorder 0, %s139
          %s144 = smul.addr %s21, 3
          %s145 = sadd.s32 %s135, %s144
          %s146 = smul.addr %s145, 64
          %s147 = scalar_lea.hbm %s0, %s146
          %s148 = smul.u32 %s138, 4
          %s149 = sshll.u32 %s148, 4
          %s150 = sshll.u32 %s134, 4
          %s151 = int_to_ptr.vmem [resolvable:$true] %s150
          %153 = dma.hbm_to_vmem [thread:$0]  (%p143), %s147, %s149, %s151, %s131
        $region20: #{tpu_custom_call.1} parent=15 // pred_fallthru
          _
        // Predicated region
        $region21: #{tpu_custom_call.1} parent=15 // pred_check
          %p154 = pneg %p76
        $region22: #{tpu_custom_call.1} parent=15 // pred_check_branch
          %156 = sbr.rel (%p154) target = $region24
        $region23: #{tpu_custom_call.1} parent=15 // pred_region
          %s157 = sand.u32 %s66, 1
          %s158 = scalar_lea.sflag [#allocation9], %s157
          %s159 = sand.u32 %s66, 1
          %s160 = smul.addr %s159, 8
          %s161 = scalar_lea.vmem [#allocation8], %s160
          %s162 = smul.u32 2, %s22
          %s163 = ssub.s32 3, %s162
          %p164 = scmp.lt.s32.totalorder %s163, 2
          %s165 = scalar_select %p164, %s163, 2
          %s166 = smul.u32 64, %s165
          %s168 = ssub.s32 128, %s166
          %169 = vsyncadd %s158, %s168
          %p170 = scmp.ne.s32.totalorder 0, %s166
          %s171 = smul.addr %s21, 3
          %s172 = sadd.s32 %s162, %s171
          %s173 = smul.addr %s172, 64
          %s174 = scalar_lea.hbm %s1, %s173
          %s175 = smul.u32 %s165, 4
          %s176 = sshll.u32 %s175, 4
          %s177 = sshll.u32 %s161, 4
          %s178 = int_to_ptr.vmem [resolvable:$true] %s177
          %180 = dma.hbm_to_vmem [thread:$0]  (%p170), %s174, %s176, %s178, %s158
        $region24: #{tpu_custom_call.1} parent=15 // pred_fallthru
          _
      $region16: #{tpu_custom_call.1} parent=5 // pred_fallthru
        _
      %p181 = scmp.le.s32.totalorder 1, %s14
      %p182 = scmp.lt.s32.totalorder %s14, 3
      %p183 = pnand %p181, %p182
      %p184 = pneg %p183
      // Predicated region
      $region25: #{tpu_custom_call.1} parent=5 // pred_check
        _
      $region26: #{tpu_custom_call.1} parent=5 // pred_check_branch
        %186 = sbr.rel (%p183) target = $region28
      $region27: #{tpu_custom_call.1} parent=5 // pred_region
        %s187 = ssub.s32 %s14, 1
        %s188 = sand.u32 %s41, 1
        %s189 = scalar_lea.sflag [#allocation7], %s188
        %s190 = sand.u32 %s41, 1
        %s191 = smul.addr %s190, 8
        %s192 = scalar_lea.vmem [#allocation6], %s191
        // Predicated region
        $region29: #{tpu_custom_call.1} parent=27 // pred_check
          %p193 = pneg %p54
        $region30: #{tpu_custom_call.1} parent=27 // pred_check_branch
          %195 = sbr.rel (%p193) target = $region32
        $region31: #{tpu_custom_call.1} parent=27 // pred_region
          %196 = dma.done %s189, 128
        $region32: #{tpu_custom_call.1} parent=27 // pred_fallthru
          _
        %s197 = sand.u32 %s69, 1
        %s198 = scalar_lea.sflag [#allocation9], %s197
        %s199 = sand.u32 %s69, 1
        %s200 = smul.addr %s199, 8
        %s201 = scalar_lea.vmem [#allocation8], %s200
        // Predicated region
        $region33: #{tpu_custom_call.1} parent=27 // pred_check
          %p202 = pneg %p82
        $region34: #{tpu_custom_call.1} parent=27 // pred_check_branch
          %204 = sbr.rel (%p202) target = $region36
        $region35: #{tpu_custom_call.1} parent=27 // pred_region
          %205 = dma.done %s198, 128
        $region36: #{tpu_custom_call.1} parent=27 // pred_fallthru
          _
        %s206 = sand.u32 %s41, 1
        %s207 = scalar_lea.sflag [#allocation7], %s206
        %s208 = sand.u32 %s41, 1
        %s209 = smul.addr %s208, 8
        %s210 = scalar_lea.vmem [#allocation6], %s209
        %p211 = pneg %p54
        %p212 = pneg %p51
        %s213 = sand.u32 %s69, 1
        %s214 = scalar_lea.sflag [#allocation9], %s213
        %s215 = sand.u32 %s69, 1
        %s216 = smul.addr %s215, 8
        %s217 = scalar_lea.vmem [#allocation8], %s216
        %p218 = pneg %p82
        %p219 = pneg %p79
        %p220 = pneg %p108
        %p221 = pneg %p105
        %p222 = scmp.lt.s32.totalorder %s23, 0
        %s223 = scalar_select %p222, %s23, 0
        %s224 = smul.addr %s223, 4
        %s225 = scalar_lea.vmem %s2, %s224
        %s226 = smul.u32 2, %s24
        %s227 = ssub.s32 3, %s226
        %p228 = scmp.lt.s32.totalorder %s227, 2
        %s229 = scalar_select %p228, %s227, 2
        %s230 = smul.u32 64, %s229
        %s231 = smul.u32 2, %s24
        %s232 = ssub.s32 3, %s231
        %p233 = scmp.lt.s32.totalorder %s232, 2
        %s234 = scalar_select %p233, %s232, 2
        %s235 = smul.u32 64, %s234
        %p236 = scmp.lt.s32.totalorder %s23, 0
        %s237 = scalar_select %p236, %s23, 0
        %s238 = smul.addr %s237, 4
        %s239 = scalar_lea.vmem %s2, %s238
        %p240 = scmp.eq.s32.totalorder %s24, 0
        // Predicated region
        $region37: #{tpu_custom_call.1} parent=27 // pred_check
          %p241 = pneg %p240
        $region38: #{tpu_custom_call.1} parent=27 // pred_check_branch
          %243 = sbr.rel (%p241) target = $region40
        $region39: #{tpu_custom_call.1} parent=27 // pred_region
          %vm244 = vcmask 3072
          %245 = vst.msk [vmem:[#allocation2] sm:$0xf] %vm244, 0.0
          %246 = vst.msk [vmem:[#allocation3] sm:$0xf] %vm244, 0.0
          %247 = vst.msk [vmem:[#allocation4] sm:$0xf] %vm244, 0.0
          %248 = vst.msk [vmem:[#allocation5] sm:$0xf] %vm244, 0.0
        $region40: #{tpu_custom_call.1} parent=27 // pred_fallthru
          _
        %p249 = scmp.lt.s32.totalorder %s24, 1
        // Predicated region
        $region41: #{tpu_custom_call.1} parent=27 // pred_check
          %p250 = pneg %p249
        $region42: #{tpu_custom_call.1} parent=27 // pred_check_branch
          %252 = sbr.rel (%p250) target = $region44
        $region43: #{tpu_custom_call.1} parent=27 // pred_region
          %v253 = vld [vmem:[%s192] sm:$0xff]
          %v254 = vld [vmem:[%s201] sm:$0xff]
          %v255 = vsub.f32 0.0, %v253
          %v256 = vmul.f32 %v255, 1.442695
          %v257 = vpow.pop %v256
          %v258 = vadd.f32 %v257, 1.0
          %v259 = vrcp.pop %v258
          %v260 = vmul.f32 1.0, %v259
          %v261 = vadd.f32 %v260, 0.7
          %v262 = vmin.f32 %v261, 1.0
          %v263 = vmul.f32 %v262, %v260
          %v264 = vmul.f32 %v263, %v254
          %v265 = vmul.f32 %v263, %v263
          %v266 = vmul.f32 %v254, %v254
          %v267 = vadd.f32 %v265, %v266
          %v268 = vsub.f32 1.0, %v260
          %v269 = vsub.f32 1.0, %v254
          %v270 = vadd.f32 %v268, 0.5
          %v271 = vmin.f32 %v270, 1.0
          %v272 = vmul.f32 %v271, %v268
          %v273 = vmul.f32 %v272, %v269
          %v274 = vmul.f32 %v272, %v272
          %v275 = vmul.f32 %v269, %v269
          %v276 = vadd.f32 %v274, %v275
          %v277 = vld [vmem:[#allocation2] sm:$0xf]
          %v279 = vcombine.high %v264, %v264
          %vm281 = vcmask 1043456
          %v282 = vsel %vm281, %v264, 0.0
          %v283 = vsel %vm281, %v279, 0.0
          %v284 = vadd.f32 %v282, %v283
          %285 = vadd.xlane.f32.xlu0 %v284
          %v286 = vpop.xlane.xlu0 %285
          %v287 = vadd.f32 %v277, %v286
          %vm288 = vcmask 3072
          %289 = vst.msk [vmem:[#allocation2] sm:$0xf] %vm288, %v287
          %v290 = vld [vmem:[#allocation3] sm:$0xf]
          %v292 = vcombine.high %v267, %v267
          %v294 = vsel %vm281, %v267, 0.0
          %v295 = vsel %vm281, %v292, 0.0
          %v296 = vadd.f32 %v294, %v295
          %297 = vadd.xlane.f32.xlu0 %v296
          %v298 = vpop.xlane.xlu0 %297
          %v299 = vadd.f32 %v290, %v298
          %300 = vst.msk [vmem:[#allocation3] sm:$0xf] %vm288, %v299
          %v301 = vld [vmem:[#allocation4] sm:$0xf]
          %v303 = vcombine.high %v273, %v273
          %v305 = vsel %vm281, %v273, 0.0
          %v306 = vsel %vm281, %v303, 0.0
          %v307 = vadd.f32 %v305, %v306
          %308 = vadd.xlane.f32.xlu0 %v307
          %v309 = vpop.xlane.xlu0 %308
          %v310 = vadd.f32 %v301, %v309
          %311 = vst.msk [vmem:[#allocation4] sm:$0xf] %vm288, %v310
          %v312 = vld [vmem:[#allocation5] sm:$0xf]
          %v314 = vcombine.high %v276, %v276
          %v316 = vsel %vm281, %v276, 0.0
          %v317 = vsel %vm281, %v314, 0.0
          %v318 = vadd.f32 %v316, %v317
          %319 = vadd.xlane.f32.xlu0 %v318
          %v320 = vpop.xlane.xlu0 %319
          %v321 = vadd.f32 %v312, %v320
          %322 = vst.msk [vmem:[#allocation5] sm:$0xf] %vm288, %v321
        $region44: #{tpu_custom_call.1} parent=27 // pred_fallthru
          _
        %p323 = scmp.eq.s32.totalorder %s24, 1
        // Predicated region
        $region45: #{tpu_custom_call.1} parent=27 // pred_check
          %p324 = pneg %p323
        $region46: #{tpu_custom_call.1} parent=27 // pred_check_branch
          %326 = sbr.rel (%p324) target = $region48
        $region47: #{tpu_custom_call.1} parent=27 // pred_region
          %v327 = vld [vmem:[%s192] sm:$0xff]
          %v328 = vld [vmem:[%s201] sm:$0xff]
          %v329 = vlaneseq
          %v330 = vand.u32 %v329, 127
          %v331 = vadd.s32 %v330, 128
          %s332 = smul.u32 %s24, 256
          %v333 = vstv %s332
          %v334 = vadd.s32 %v330, %v333
          %v335 = vadd.s32 %v331, %v333
          %vm336 = vcmp.lt.s32.totalorder %v334, 300
          %vm337 = vcmp.lt.s32.totalorder %v335, 300
          %v338 = vsel %vm336, 1, 0
          %v339 = vsel %vm337, 1, 0
          %v340 = vcvt.s32.f32 %v338
          %v341 = vcvt.s32.f32 %v339
          %v343 = vcombine.high %v327, %v327
          %v345 = vsel %vm336, %v327, 0.0
          %v346 = vsel %vm337, %v343, 0.0
          %v348 = vcombine.high %v328, %v328
          %v350 = vsel %vm336, %v328, 0.0
          %v351 = vsel %vm337, %v348, 0.0
          %v352 = vsub.f32 0.0, %v345
          %v353 = vsub.f32 0.0, %v346
          %v354 = vmul.f32 %v352, 1.442695
          %v355 = vpow.pop %v354
          %v356 = vmul.f32 %v353, 1.442695
          %v357 = vpow.pop %v356
          %v358 = vadd.f32 %v355, 1.0
          %v359 = vadd.f32 %v357, 1.0
          %v360 = vrcp.pop %v358
          %v361 = vmul.f32 1.0, %v360
          %v362 = vrcp.pop %v359
          %v363 = vmul.f32 1.0, %v362
          %v364 = vadd.f32 %v361, 0.7
          %v365 = vadd.f32 %v363, 0.7
          %v366 = vmin.f32 %v364, 1.0
          %v367 = vmin.f32 %v365, 1.0
          %v368 = vmul.f32 %v366, %v361
          %v369 = vmul.f32 %v367, %v363
          %v370 = vmul.f32 %v368, %v350
          %v371 = vmul.f32 %v369, %v351
          %v372 = vmul.f32 %v368, %v368
          %v373 = vmul.f32 %v369, %v369
          %v374 = vmul.f32 %v350, %v350
          %v375 = vmul.f32 %v351, %v351
          %v376 = vadd.f32 %v372, %v374
          %v377 = vadd.f32 %v373, %v375
          %v378 = vsub.f32 1.0, %v361
          %v379 = vsub.f32 1.0, %v363
          %v380 = vsub.f32 1.0, %v350
          %v381 = vsub.f32 1.0, %v351
          %v382 = vadd.f32 %v378, 0.5
          %v383 = vadd.f32 %v379, 0.5
          %v384 = vmin.f32 %v382, 1.0
          %v385 = vmin.f32 %v383, 1.0
          %v386 = vmul.f32 %v384, %v378
          %v387 = vmul.f32 %v385, %v379
          %v388 = vmul.f32 %v386, %v380
          %v389 = vmul.f32 %v387, %v381
          %v390 = vmul.f32 %v386, %v386
          %v391 = vmul.f32 %v387, %v387
          %v392 = vmul.f32 %v380, %v380
          %v393 = vmul.f32 %v381, %v381
          %v394 = vadd.f32 %v390, %v392
          %v395 = vadd.f32 %v391, %v393
          %v396 = vmul.f32 %v370, %v340
          %v397 = vmul.f32 %v371, %v341
          %v398 = vmul.f32 %v376, %v340
          %v399 = vmul.f32 %v377, %v341
          %v400 = vmul.f32 %v388, %v340
          %v401 = vmul.f32 %v389, %v341
          %v402 = vmul.f32 %v394, %v340
          %v403 = vmul.f32 %v395, %v341
          %v404 = vld [vmem:[#allocation2] sm:$0xf]
          %vm405 = vcmask 1043456
          %v406 = vsel %vm405, %v396, 0.0
          %v407 = vsel %vm405, %v397, 0.0
          %v408 = vadd.f32 %v406, %v407
          %409 = vadd.xlane.f32.xlu0 %v408
          %v410 = vpop.xlane.xlu0 %409
          %v411 = vadd.f32 %v404, %v410
          %vm412 = vcmask 3072
          %413 = vst.msk [vmem:[#allocation2] sm:$0xf] %vm412, %v411
          %v414 = vld [vmem:[#allocation3] sm:$0xf]
          %v415 = vsel %vm405, %v398, 0.0
          %v416 = vsel %vm405, %v399, 0.0
          %v417 = vadd.f32 %v415, %v416
          %418 = vadd.xlane.f32.xlu0 %v417
          %v419 = vpop.xlane.xlu0 %418
          %v420 = vadd.f32 %v414, %v419
          %421 = vst.msk [vmem:[#allocation3] sm:$0xf] %vm412, %v420
          %v422 = vld [vmem:[#allocation4] sm:$0xf]
          %v423 = vsel %vm405, %v400, 0.0
          %v424 = vsel %vm405, %v401, 0.0
          %v425 = vadd.f32 %v423, %v424
          %426 = vadd.xlane.f32.xlu0 %v425
          %v427 = vpop.xlane.xlu0 %426
          %v428 = vadd.f32 %v422, %v427
          %429 = vst.msk [vmem:[#allocation4] sm:$0xf] %vm412, %v428
          %v430 = vld [vmem:[#allocation5] sm:$0xf]
          %v431 = vsel %vm405, %v402, 0.0
          %v432 = vsel %vm405, %v403, 0.0
          %v433 = vadd.f32 %v431, %v432
          %434 = vadd.xlane.f32.xlu0 %v433
          %v435 = vpop.xlane.xlu0 %434
          %v436 = vadd.f32 %v430, %v435
          %437 = vst.msk [vmem:[#allocation5] sm:$0xf] %vm412, %v436
          %v438 = vld [vmem:[#allocation2] sm:$0xf]
          %v439 = vmul.f32 %v438, 2.0
          %v440 = vld [vmem:[#allocation3] sm:$0xf]
          %v441 = vrcp.pop %v440
          %v442 = vmul.f32 %v439, %v441
          %v443 = vsub.f32 1.0, %v442
          %v444 = vld [vmem:[#allocation4] sm:$0xf]
          %v445 = vmul.f32 %v444, 2.0
          %v446 = vld [vmem:[#allocation5] sm:$0xf]
          %v447 = vrcp.pop %v446
          %v448 = vmul.f32 %v445, %v447
          %v449 = vsub.f32 1.0, %v448
          %v450 = vmul.f32 %v443, 0.3
          %v451 = vmul.f32 %v449, 0.7
          %v452 = vadd.f32 %v450, %v451
          %453 = vst.msk [vmem:[%s239] sm:$0xf] %vm412, %v452
        $region48: #{tpu_custom_call.1} parent=27 // pred_fallthru
          _
        %p454 = scmp.lt.s32.totalorder %s23, 0
        %s455 = scalar_select %p454, %s23, 0
        %s456 = smul.addr %s455, 4
        %s457 = scalar_lea.vmem %s2, %s456
        // Predicated region
        $region49: #{tpu_custom_call.1} parent=27 // pred_check
          %p458 = pneg %p105
        $region50: #{tpu_custom_call.1} parent=27 // pred_check_branch
          %460 = sbr.rel (%p458) target = $region52
        $region51: #{tpu_custom_call.1} parent=27 // pred_region
          _
        $region52: #{tpu_custom_call.1} parent=27 // pred_fallthru
          _
        // Predicated region
        $region53: #{tpu_custom_call.1} parent=27 // pred_check
          %p461 = pneg %p105
        $region54: #{tpu_custom_call.1} parent=27 // pred_check_branch
          %463 = sbr.rel (%p461) target = $region56
        $region55: #{tpu_custom_call.1} parent=27 // pred_region
          %p464 = scmp.lt.s32.totalorder %s23, 0
          %s465 = scalar_select %p464, %s23, 0
          %s466 = smul.addr %s465, 4
          %s467 = scalar_lea.vmem %s2, %s466
        $region56: #{tpu_custom_call.1} parent=27 // pred_fallthru
          _
      $region28: #{tpu_custom_call.1} parent=5 // pred_fallthru
        _
      %p468 = scmp.le.s32.totalorder 2, %s14
      // Predicated region
      $region57: #{tpu_custom_call.1} parent=5 // pred_check
        %p469 = pneg %p468
      $region58: #{tpu_custom_call.1} parent=5 // pred_check_branch
        %471 = sbr.rel (%p469) target = $region60
      $region59: #{tpu_custom_call.1} parent=5 // pred_region
        %s472 = ssub.s32 %s14, 2
      $region60: #{tpu_custom_call.1} parent=5 // pred_fallthru
        _
    $region6: #{tpu_custom_call.1} parent=1 // loop_footer
      %s18 = sadd.s32 1, %s14
    $region7: #{tpu_custom_call.1} parent=1 // loop_footer_branch
      %13 = sbr.rel target = $region3
    $region8: #{tpu_custom_call.1} parent=1 // loop_exit
      _
    %473 = vsyncpa [#allocation7], 1
    %s474 = scalar_lea.sflag [#allocation7], 1
    %475 = vsyncpa %s474, 1
    %476 = vsyncpa [#allocation9], 1
    %s477 = scalar_lea.sflag [#allocation9], 1
    %478 = vsyncpa %s477, 1

</llo_original>
